<compile_context>
chip_gen: v7x
topology: tpu7x:2x2x1
jax: 0.10.0
libtpu: 0.0.40
codegen_flags: <defaults>
</compile_context>

<pallas_src>
import functools

import jax
import jax.numpy as jnp
from jax.experimental import pallas as pl
from jax.experimental.pallas import tpu as pltpu

EPS = 1e-5        # nn.LayerNorm default eps
NEG_INF = -1e9    # mask fill value


def _pick_row_tile(n, target=512):
    """Largest row tile <= target that divides n (falls back to target).
    512 reaches ~85% of HBM roofline on v5e/v6e; drop to 256 on v7x if VMEM-tight."""
    if n <= target:
        return n
    for t in (target, 256, 128, 64, 32, 16, 8):
        if n % t == 0:
            return t
    return target


def _vmem_limit(*nbytes):
    """Scoped-VMEM limit: double-buffered blocks + 4 MiB headroom, >= 32 MiB."""
    total = 2 * sum(int(b) for b in nbytes) + (4 << 20)
    return int(min(max(total, 32 << 20), 112 << 20))


# ----------------------------------------------------------------------------
# Kernel 1: fused self-attention  (QKV projection + per-head softmax(QK^T)V)
#           one grid step per batch element, weights resident in VMEM.
# ----------------------------------------------------------------------------
def _self_attn_kernel(x_ref, wqkv_ref, bqkv_ref, *rest, H, Dh, mask_mode):
    if mask_mode == "array":
        mask_ref, o_ref, qkv_scr = rest
    else:
        (o_ref, qkv_scr) = rest
    E = H * Dh
    Sq = x_ref.shape[0]

    # QKV projection (scale already folded into the q columns of wqkv/bqkv).
    x = x_ref[...].astype(jnp.bfloat16)
    qkv_scr[...] = (jnp.dot(x, wqkv_ref[...], preferred_element_type=jnp.float32)
                    + bqkv_ref[...]).astype(jnp.bfloat16)

    if mask_mode == "causal":
        row = jax.lax.broadcasted_iota(jnp.int32, (Sq, Sq), 0)
        col = jax.lax.broadcasted_iota(jnp.int32, (Sq, Sq), 1)
        keep = row >= col
    elif mask_mode == "array":
        keep = mask_ref[...] != 0.0
    else:
        keep = None

    for h in range(H):                       # static unroll over heads
        qh = qkv_scr[:, h * Dh:(h + 1) * Dh]                 # ref slices (views)
        kh = qkv_scr[:, E + h * Dh:E + (h + 1) * Dh]
        vh = qkv_scr[:, 2 * E + h * Dh:2 * E + (h + 1) * Dh]
        s = jax.lax.dot_general(qh, kh, (((1,), (1,)), ((), ())),
                                preferred_element_type=jnp.float32)
        if keep is not None:
            s = jnp.where(keep, s, NEG_INF)
        m = jnp.max(s, axis=-1, keepdims=True)
        p = jnp.exp(s - m)
        p = p * pl.reciprocal(jnp.sum(p, axis=-1, keepdims=True), approx=True)
        oh = jnp.dot(p.astype(jnp.bfloat16), vh, preferred_element_type=jnp.float32)
        o_ref[:, h * Dh:(h + 1) * Dh] = oh.astype(o_ref.dtype)   # direct store


def pallas_self_attention(x2d, wqkv, bqkv, mask, *, B, S, H, Dh, mask_mode):
    E = H * Dh
    kern = functools.partial(_self_attn_kernel, H=H, Dh=Dh, mask_mode=mask_mode)
    arrays = [x2d, wqkv, bqkv]
    in_specs = [
        pl.BlockSpec((S, E), lambda b: (b, 0)),
        pl.BlockSpec((E, 3 * E), lambda b: (0, 0)),   # weights resident
        pl.BlockSpec((1, 3 * E), lambda b: (0, 0)),
    ]
    if mask_mode == "array":
        arrays.append(mask)
        in_specs.append(pl.BlockSpec((S, S), lambda b: (0, 0)))
    vmem = _vmem_limit(S * E * 4, E * 3 * E * 2, S * 3 * E * 2, S * E * 2, S * S * 4)
    return pl.pallas_call(
        kern,
        out_shape=jax.ShapeDtypeStruct((B * S, E), jnp.bfloat16),
        grid=(B,),
        in_specs=in_specs,
        out_specs=pl.BlockSpec((S, E), lambda b: (b, 0)),
        scratch_shapes=[pltpu.VMEM((S, 3 * E), jnp.bfloat16)],
        compiler_params=pltpu.CompilerParams(
            dimension_semantics=("parallel",), vmem_limit_bytes=vmem),
    )(*arrays)


# ----------------------------------------------------------------------------
# Kernel 2: fused cross-attention (Q and KV projections + attention)
# ----------------------------------------------------------------------------
def _cross_attn_kernel(x_ref, enc_ref, wq_ref, bq_ref, wkv_ref, bkv_ref, *rest,
                       H, Dh, mask_mode):
    if mask_mode == "array":
        mask_ref, o_ref, q_scr, kv_scr = rest
    else:
        (o_ref, q_scr, kv_scr) = rest
    E = H * Dh
    Sq = x_ref.shape[0]
    Skv = enc_ref.shape[0]

    x = x_ref[...].astype(jnp.bfloat16)
    enc = enc_ref[...].astype(jnp.bfloat16)
    q_scr[...] = (jnp.dot(x, wq_ref[...], preferred_element_type=jnp.float32)
                  + bq_ref[...]).astype(jnp.bfloat16)
    kv_scr[...] = (jnp.dot(enc, wkv_ref[...], preferred_element_type=jnp.float32)
                   + bkv_ref[...]).astype(jnp.bfloat16)

    if mask_mode == "causal":
        row = jax.lax.broadcasted_iota(jnp.int32, (Sq, Skv), 0)
        col = jax.lax.broadcasted_iota(jnp.int32, (Sq, Skv), 1)
        keep = row >= col
    elif mask_mode == "array":
        keep = mask_ref[...] != 0.0
    else:
        keep = None

    for h in range(H):
        qh = q_scr[:, h * Dh:(h + 1) * Dh]
        kh = kv_scr[:, h * Dh:(h + 1) * Dh]
        vh = kv_scr[:, E + h * Dh:E + (h + 1) * Dh]
        s = jax.lax.dot_general(qh, kh, (((1,), (1,)), ((), ())),
                                preferred_element_type=jnp.float32)
        if keep is not None:
            s = jnp.where(keep, s, NEG_INF)
        m = jnp.max(s, axis=-1, keepdims=True)
        p = jnp.exp(s - m)
        p = p * pl.reciprocal(jnp.sum(p, axis=-1, keepdims=True), approx=True)
        oh = jnp.dot(p.astype(jnp.bfloat16), vh, preferred_element_type=jnp.float32)
        o_ref[:, h * Dh:(h + 1) * Dh] = oh.astype(o_ref.dtype)


def pallas_cross_attention(x2d, enc2d, wq, bq, wkv, bkv, mask, *,
                           B, Sq, Skv, H, Dh, mask_mode):
    E = H * Dh
    kern = functools.partial(_cross_attn_kernel, H=H, Dh=Dh, mask_mode=mask_mode)
    arrays = [x2d, enc2d, wq, bq, wkv, bkv]
    in_specs = [
        pl.BlockSpec((Sq, E), lambda b: (b, 0)),
        pl.BlockSpec((Skv, E), lambda b: (b, 0)),
        pl.BlockSpec((E, E), lambda b: (0, 0)),
        pl.BlockSpec((1, E), lambda b: (0, 0)),
        pl.BlockSpec((E, 2 * E), lambda b: (0, 0)),
        pl.BlockSpec((1, 2 * E), lambda b: (0, 0)),
    ]
    if mask_mode == "array":
        arrays.append(mask)
        in_specs.append(pl.BlockSpec((Sq, Skv), lambda b: (0, 0)))
    vmem = _vmem_limit(Sq * E * 4, Skv * E * 4, E * E * 2, E * 2 * E * 2,
                       Sq * E * 2, Skv * 2 * E * 2, Sq * Skv * 4)
    return pl.pallas_call(
        kern,
        out_shape=jax.ShapeDtypeStruct((B * Sq, E), jnp.bfloat16),
        grid=(B,),
        in_specs=in_specs,
        out_specs=pl.BlockSpec((Sq, E), lambda b: (b, 0)),
        scratch_shapes=[pltpu.VMEM((Sq, E), jnp.bfloat16),
                        pltpu.VMEM((Skv, 2 * E), jnp.bfloat16)],
        compiler_params=pltpu.CompilerParams(
            dimension_semantics=("parallel",), vmem_limit_bytes=vmem),
    )(*arrays)


# ----------------------------------------------------------------------------
# Kernel 3: fused output-projection + residual add + LayerNorm  (bf16 out)
# ----------------------------------------------------------------------------
def _proj_add_ln_kernel(a_ref, res_ref, w_ref, b_ref, g_ref, be_ref, o_ref):
    h = jnp.dot(a_ref[...].astype(jnp.bfloat16), w_ref[...],
                preferred_element_type=jnp.float32) + b_ref[...]
    y = h + res_ref[...].astype(jnp.float32)
    mu = jnp.mean(y, axis=-1, keepdims=True)
    var = jnp.mean((y - mu) ** 2, axis=-1, keepdims=True)
    yhat = (y - mu) * jax.lax.rsqrt(var + EPS)
    o_ref[...] = (yhat * g_ref[...] + be_ref[...]).astype(o_ref.dtype)


def pallas_proj_add_ln(a2d, res2d, w, b, gamma, beta, out_dtype=jnp.bfloat16):
    N, E = a2d.shape
    tn = _pick_row_tile(N)
    vmem = _vmem_limit(tn * E * 4, tn * E * 4, E * E * 2, tn * E * 4)
    return pl.pallas_call(
        _proj_add_ln_kernel,
        out_shape=jax.ShapeDtypeStruct((N, E), out_dtype),
        grid=(pl.cdiv(N, tn),),
        in_specs=[
            pl.BlockSpec((tn, E), lambda i: (i, 0)),
            pl.BlockSpec((tn, E), lambda i: (i, 0)),
            pl.BlockSpec((E, E), lambda i: (0, 0)),     # weight resident
            pl.BlockSpec((1, E), lambda i: (0, 0)),
            pl.BlockSpec((1, E), lambda i: (0, 0)),
            pl.BlockSpec((1, E), lambda i: (0, 0)),
        ],
        out_specs=pl.BlockSpec((tn, E), lambda i: (i, 0)),
        compiler_params=pltpu.CompilerParams(
            dimension_semantics=("parallel",), vmem_limit_bytes=vmem),
    )(a2d, res2d, w, b, gamma, beta)


# ----------------------------------------------------------------------------
# Kernel 4: fused FFN (Linear-ReLU-Linear) + residual add + LayerNorm
# ----------------------------------------------------------------------------
def _ffn_add_ln_kernel(x_ref, w1_ref, b1_ref, w2_ref, b2_ref, g_ref, be_ref, o_ref):
    x = x_ref[...]
    h = jnp.dot(x.astype(jnp.bfloat16), w1_ref[...],
                preferred_element_type=jnp.float32) + b1_ref[...]
    h = jnp.maximum(h, 0.0)
    o = jnp.dot(h.astype(jnp.bfloat16), w2_ref[...],
                preferred_element_type=jnp.float32) + b2_ref[...]
    y = o + x.astype(jnp.float32)
    mu = jnp.mean(y, axis=-1, keepdims=True)
    var = jnp.mean((y - mu) ** 2, axis=-1, keepdims=True)
    yhat = (y - mu) * jax.lax.rsqrt(var + EPS)
    o_ref[...] = (yhat * g_ref[...] + be_ref[...]).astype(o_ref.dtype)


def pallas_ffn_add_ln(x2d, w1, b1, w2, b2, gamma, beta, out_dtype=jnp.float32):
    N, E = x2d.shape
    Hf = w1.shape[1]
    tn = _pick_row_tile(N)
    vmem = _vmem_limit(tn * E * 4, E * Hf * 2, Hf * E * 2, tn * Hf * 4, tn * E * 4)
    return pl.pallas_call(
        _ffn_add_ln_kernel,
        out_shape=jax.ShapeDtypeStruct((N, E), out_dtype),
        grid=(pl.cdiv(N, tn),),
        in_specs=[
            pl.BlockSpec((tn, E), lambda i: (i, 0)),
            pl.BlockSpec((E, Hf), lambda i: (0, 0)),    # weights resident
            pl.BlockSpec((1, Hf), lambda i: (0, 0)),
            pl.BlockSpec((Hf, E), lambda i: (0, 0)),
            pl.BlockSpec((1, E), lambda i: (0, 0)),
            pl.BlockSpec((1, E), lambda i: (0, 0)),
            pl.BlockSpec((1, E), lambda i: (0, 0)),
        ],
        out_specs=pl.BlockSpec((tn, E), lambda i: (i, 0)),
        compiler_params=pltpu.CompilerParams(
            dimension_semantics=("parallel",), vmem_limit_bytes=vmem),
    )(x2d, w1, b1, w2, b2, gamma, beta)


# ----------------------------------------------------------------------------
# Parameter preparation (done ONCE, outside the forward path)
# ----------------------------------------------------------------------------
def prepare_params(params, num_heads):
    E, Hf = params["ff_w1"].shape
    Dh = E // num_heads
    scale = 1.0 / (Dh ** 0.5)
    sa, ca = params["self_attn"], params["cross_attn"]
    return {
        "num_heads": num_heads,
        "self": {
            "wqkv": jnp.concatenate([sa["wq"] * scale, sa["wk"], sa["wv"]],
                                    axis=1).astype(jnp.bfloat16),
            "bqkv": jnp.concatenate([sa["bq"] * scale, sa["bk"], sa["bv"]],
                                    axis=0).reshape(1, 3 * E).astype(jnp.float32),
            "wo": sa["wo"].astype(jnp.bfloat16),
            "bo": sa["bo"].reshape(1, E).astype(jnp.float32),
        },
        "cross": {
            "wq": (ca["wq"] * scale).astype(jnp.bfloat16),
            "bq": (ca["bq"] * scale).reshape(1, E).astype(jnp.float32),
            "wkv": jnp.concatenate([ca["wk"], ca["wv"]], axis=1).astype(jnp.bfloat16),
            "bkv": jnp.concatenate([ca["bk"], ca["bv"]],
                                   axis=0).reshape(1, 2 * E).astype(jnp.float32),
            "wo": ca["wo"].astype(jnp.bfloat16),
            "bo": ca["bo"].reshape(1, E).astype(jnp.float32),
        },
        "ln1_g": params["ln1_g"].reshape(1, E), "ln1_b": params["ln1_b"].reshape(1, E),
        "ln2_g": params["ln2_g"].reshape(1, E), "ln2_b": params["ln2_b"].reshape(1, E),
        "ln3_g": params["ln3_g"].reshape(1, E), "ln3_b": params["ln3_b"].reshape(1, E),
        "ff_w1": params["ff_w1"].astype(jnp.bfloat16),
        "ff_b1": params["ff_b1"].reshape(1, Hf).astype(jnp.float32),
        "ff_w2": params["ff_w2"].astype(jnp.bfloat16),
        "ff_b2": params["ff_b2"].reshape(1, E).astype(jnp.float32),
    }


def _mask_args(mask, Sq, Skv):
    if mask is None:
        return "none", None
    if isinstance(mask, str):
        assert mask == "causal"
        return "causal", None
    return "array", jnp.asarray(mask, jnp.float32).reshape(Sq, Skv)


def decoder_block_forward(prep, x, encoder_outputs, target_mask=None, source_mask=None):
    B, S, E = x.shape
    H = prep["num_heads"]
    Dh = E // H
    Skv = encoder_outputs.shape[1]
    x2d = x.reshape(B * S, E)

    tmode, tmask = _mask_args(target_mask, S, S)
    smode, smask = _mask_args(source_mask, S, Skv)

    # --- masked self-attention (QKV fused) + (O-proj + add & norm fused) ---
    attn = pallas_self_attention(x2d, prep["self"]["wqkv"], prep["self"]["bqkv"],
                                 tmask, B=B, S=S, H=H, Dh=Dh, mask_mode=tmode)
    y1 = pallas_proj_add_ln(attn, x2d, prep["self"]["wo"], prep["self"]["bo"],
                            prep["ln1_g"], prep["ln1_b"], out_dtype=jnp.bfloat16)
    # TODO(synk): nn.Dropout is identity at inference; not implemented as a kernel.

    # --- cross-attention (Q/KV fused) + (O-proj + add & norm fused) ---
    attn = pallas_cross_attention(y1, encoder_outputs.reshape(B * Skv, E),
                                  prep["cross"]["wq"], prep["cross"]["bq"],
                                  prep["cross"]["wkv"], prep["cross"]["bkv"],
                                  smask, B=B, Sq=S, Skv=Skv, H=H, Dh=Dh,
                                  mask_mode=smode)
    y2 = pallas_proj_add_ln(attn, y1, prep["cross"]["wo"], prep["cross"]["bo"],
                            prep["ln2_g"], prep["ln2_b"], out_dtype=jnp.bfloat16)

    # --- feed-forward + add & norm (fully fused), final output f32 ---
    out = pallas_ffn_add_ln(y2, prep["ff_w1"], prep["ff_b1"],
                            prep["ff_w2"], prep["ff_b2"],
                            prep["ln3_g"], prep["ln3_b"], out_dtype=jnp.float32)
    return out.reshape(B, S, E)


# ----------------------------------------------------------------------------
# Deterministic parameter init (PyTorch Linear-style uniform bounds)
# ----------------------------------------------------------------------------
def _init_linear(key, din, dout):
    kw, kb = jax.random.split(key)
    bound = 1.0 / (din ** 0.5)
    w = jax.random.uniform(kw, (din, dout), jnp.float32, -bound, bound)
    b = jax.random.uniform(kb, (dout,), jnp.float32, -bound, bound)
    return w, b


def _init_mha(key, embed_dim):
    ks = jax.random.split(key, 4)
    p = {}
    for name, k in zip(("q", "k", "v", "o"), ks):
        w, b = _init_linear(k, embed_dim, embed_dim)
        p["w" + name], p["b" + name] = w, b
    return p


def init_decoder_params(key, embed_dim, ffn_hidden):
    keys = jax.random.split(key, 4)
    w1, b1 = _init_linear(keys[2], embed_dim, ffn_hidden)
    w2, b2 = _init_linear(keys[3], ffn_hidden, embed_dim)
    return {
        "self_attn": _init_mha(keys[0], embed_dim),
        "cross_attn": _init_mha(keys[1], embed_dim),
        "ln1_g": jnp.ones((embed_dim,), jnp.float32),
        "ln1_b": jnp.zeros((embed_dim,), jnp.float32),
        "ln2_g": jnp.ones((embed_dim,), jnp.float32),
        "ln2_b": jnp.zeros((embed_dim,), jnp.float32),
        "ln3_g": jnp.ones((embed_dim,), jnp.float32),
        "ln3_b": jnp.zeros((embed_dim,), jnp.float32),
        "ff_w1": w1, "ff_b1": b1,
        "ff_w2": w2, "ff_b2": b2,
    }


# ----------------------------------------------------------------------------
# Pure-JAX reference (mirrors the kernels' bf16/f32 mixed-precision math)
# ----------------------------------------------------------------------------
def _ref_ln(y, g, b):
    mu = jnp.mean(y, -1, keepdims=True)
    var = jnp.mean((y - mu) ** 2, -1, keepdims=True)
    return (y - mu) * jax.lax.rsqrt(var + EPS) * g + b


def _ref_sdpa(q, k, v, mask):
    s = jnp.einsum("bhqd,bhkd->bhqk", q, k, preferred_element_type=jnp.float32)
    if mask is not None:
        s = jnp.where(mask[None, None] != 0, s, NEG_INF)
    a = jax.nn.softmax(s, axis=-1).astype(jnp.bfloat16)
    o = jnp.einsum("bhqk,bhkd->bhqd", a, v, preferred_element_type=jnp.float32)
    B, H, Sq, Dh = o.shape
    return o.transpose(0, 2, 1, 3).reshape(B * Sq, H * Dh).astype(jnp.bfloat16)


def _ref_self_attn(x, ps, mask, H):
    B, S, E = x.shape
    Dh = E // H
    qkv = (jnp.dot(x.reshape(-1, E).astype(jnp.bfloat16), ps["wqkv"],
                   preferred_element_type=jnp.float32) + ps["bqkv"]).astype(jnp.bfloat16)
    qkv = qkv.reshape(B, S, 3, H, Dh).transpose(2, 0, 3, 1, 4)   # (3,B,H,S,Dh)
    return _ref_sdpa(qkv[0], qkv[1], qkv[2], mask)


def _ref_cross_attn(x2d, enc, pc, mask, H):
    B, Skv, E = enc.shape
    Sq = x2d.shape[0] // B
    Dh = E // H
    q = (jnp.dot(x2d.astype(jnp.bfloat16), pc["wq"],
                 preferred_element_type=jnp.float32) + pc["bq"]).astype(jnp.bfloat16)
    kv = (jnp.dot(enc.reshape(-1, E).astype(jnp.bfloat16), pc["wkv"],
                  preferred_element_type=jnp.float32) + pc["bkv"]).astype(jnp.bfloat16)
    q = q.reshape(B, Sq, H, Dh).transpose(0, 2, 1, 3)
    kv = kv.reshape(B, Skv, 2, H, Dh).transpose(2, 0, 3, 1, 4)
    return _ref_sdpa(q, kv[0], kv[1], mask)


def _ref_proj_add_ln(a_bf16, res, wo, bo, g, b, out_dtype):
    h = jnp.dot(a_bf16, wo, preferred_element_type=jnp.float32) + bo
    y = h + res.astype(jnp.float32)
    return _ref_ln(y, g, b).astype(out_dtype)


def _ref_decoder(prep, x, enc, tmask, smask):
    H = prep["num_heads"]
    B, S, E = x.shape
    x2d = x.reshape(-1, E)
    a = _ref_self_attn(x, prep["self"], tmask, H)
    y1 = _ref_proj_add_ln(a, x2d, prep["self"]["wo"], prep["self"]["bo"],
                          prep["ln1_g"], prep["ln1_b"], jnp.bfloat16)
    a = _ref_cross_attn(y1, enc, prep["cross"], smask, H)
    y2 = _ref_proj_add_ln(a, y1, prep["cross"]["wo"], prep["cross"]["bo"],
                          prep["ln2_g"], prep["ln2_b"], jnp.bfloat16)
    h = jnp.maximum(jnp.dot(y2.astype(jnp.bfloat16), prep["ff_w1"],
                            preferred_element_type=jnp.float32) + prep["ff_b1"], 0.0)
    o = jnp.dot(h.astype(jnp.bfloat16), prep["ff_w2"],
                preferred_element_type=jnp.float32) + prep["ff_b2"]
    y = o + y2.astype(jnp.float32)
    out = _ref_ln(y, prep["ln3_g"], prep["ln3_b"]).astype(jnp.float32)
    return out.reshape(B, S, E)


# ----------------------------------------------------------------------------
if __name__ == "__main__":
    B, S, E, H = 2, 8, 32, 4
    FFN_HIDDEN = 4 * E

    root = jax.random.PRNGKey(0)
    k_param, k_x, k_enc = jax.random.split(root, 3)

    params = init_decoder_params(k_param, E, FFN_HIDDEN)
    prep = prepare_params(params, num_heads=H)   # concat / bf16-cast weights ONCE

    x = jax.random.normal(k_x, (B, S, E), jnp.float32)
    enc_out = jax.random.normal(k_enc, (B, S, E), jnp.float32)

    # causal target mask (1 = keep, 0 = mask), no source mask
    causal_arr = jnp.tril(jnp.ones((S, S), jnp.float32))

    # preferred path: mask generated in-kernel ("causal")
    out = decoder_block_forward(prep, x, enc_out, "causal", None)
    out = jax.block_until_ready(out)

    # explicit-array mask path must agree with the in-kernel causal path
    out_arr = decoder_block_forward(prep, x, enc_out, causal_arr, None)
    out_arr = jax.block_until_ready(out_arr)

    ref = _ref_decoder(prep, x, enc_out, causal_arr, None)

    assert out.shape == (B, S, E)
    assert out.dtype == jnp.float32
    assert jnp.allclose(out, out_arr, atol=1e-5, rtol=1e-5), "causal vs array mask mismatch"
    assert jnp.allclose(out, ref, atol=2e-2, rtol=2e-2), "mismatch vs reference"

    print("KERNEL_OK")
</pallas_src>

<mosaic_0001>
module attributes {stable_mosaic.version = 11 : i64} {
  func.func @_self_attn_kernel(%arg0: i32, %arg1: memref<8x32xf32, #tpu.memory_space<vmem>>, %arg2: memref<32x96xbf16, #tpu.memory_space<vmem>>, %arg3: memref<1x96xf32, #tpu.memory_space<vmem>>, %arg4: memref<8x32xbf16, #tpu.memory_space<vmem>>, %arg5: memref<8x96xbf16, #tpu.memory_space<vmem>>) attributes {dimension_semantics = [#tpu.dimension_semantics<parallel>], iteration_bounds = array<i64: 2>, scalar_prefetch = 0 : i64, scratch_operands = 1 : i64, tpu.core_type = #tpu.core_type<tc>, window_params = [{transform_indices = @transform_0, window_bounds = array<i64: 8, 32>}, {pipeline_mode = #tpu.pipeline_mode<synchronous>, transform_indices = @transform_1, window_bounds = array<i64: 32, 96>}, {pipeline_mode = #tpu.pipeline_mode<synchronous>, transform_indices = @transform_2, window_bounds = array<i64: 1, 96>}, {transform_indices = @transform_3, window_bounds = array<i64: 8, 32>}]} {
    %c0 = arith.constant 0 : index
    %c0_0 = arith.constant 0 : index
    %0 = vector.load %arg1[%c0, %c0_0] : memref<8x32xf32, #tpu.memory_space<vmem>>, vector<8x32xf32>
    %1 = arith.truncf %0 : vector<8x32xf32> to vector<8x32xbf16>
    %c0_1 = arith.constant 0 : index
    %c0_2 = arith.constant 0 : index
    %2 = vector.load %arg2[%c0_1, %c0_2] : memref<32x96xbf16, #tpu.memory_space<vmem>>, vector<32x96xbf16>
    %cst = arith.constant dense<0.000000e+00> : vector<8x96xf32>
    %3 = tpu.matmul %1, %2, %cst {dimension_numbers = #tpu.dot_dimension_numbers<[1], [0], [0], [1], [0, 0, 1, 1], [], []>} : vector<8x32xbf16>, vector<32x96xbf16>, vector<8x96xf32> -> vector<8x96xf32>
    %c0_3 = arith.constant 0 : index
    %c0_4 = arith.constant 0 : index
    %4 = vector.load %arg3[%c0_3, %c0_4] : memref<1x96xf32, #tpu.memory_space<vmem>>, vector<1x96xf32>
    %5 = vector.broadcast %4 : vector<1x96xf32> to vector<8x96xf32>
    %6 = arith.addf %3, %5 : vector<8x96xf32>
    %7 = arith.truncf %6 : vector<8x96xf32> to vector<8x96xbf16>
    %c0_5 = arith.constant 0 : index
    %c0_6 = arith.constant 0 : index
    %8 = vector.load %arg5[%c0_5, %c0_6] : memref<8x96xbf16, #tpu.memory_space<vmem>>, vector<8x96xbf16>
    tpu.vector_store %arg5[%c0_5, %c0_6], %7 {strides = array<i32>} : memref<8x96xbf16, #tpu.memory_space<vmem>>, vector<8x96xbf16>,
    %9 = tpu.iota {dimensions = array<i32: 0>} : vector<8x8xi32>
    %10 = tpu.iota {dimensions = array<i32: 1>} : vector<8x8xi32>
    %11 = arith.cmpi sge, %9, %10 : vector<8x8xi32>
    %c0_7 = arith.constant 0 : index
    %c0_8 = arith.constant 0 : index
    %12 = vector.load %arg5[%c0_7, %c0_8] : memref<8x96xbf16, #tpu.memory_space<vmem>>, vector<8x8xbf16>
    %c0_9 = arith.constant 0 : index
    %c32 = arith.constant 32 : index
    %13 = vector.load %arg5[%c0_9, %c32] : memref<8x96xbf16, #tpu.memory_space<vmem>>, vector<8x8xbf16>
    %c0_10 = arith.constant 0 : index
    %c64 = arith.constant 64 : index
    %14 = vector.load %arg5[%c0_10, %c64] : memref<8x96xbf16, #tpu.memory_space<vmem>>, vector<8x8xbf16>
    %cst_11 = arith.constant dense<0.000000e+00> : vector<8x8xf32>
    %15 = tpu.matmul %12, %13, %cst_11 {dimension_numbers = #tpu.dot_dimension_numbers<[1], [1], [0], [0], [0, 0, 1, 0], [], []>} : vector<8x8xbf16>, vector<8x8xbf16>, vector<8x8xf32> -> vector<8x8xf32>
    %cst_12 = arith.constant -1.000000e+09 : f32
    %16 = vector.broadcast %cst_12 : f32 to vector<8x8xf32>
    %17 = arith.select %11, %15, %16 : vector<8x8xi1>, vector<8x8xf32>
    %cst_13 = arith.constant dense<0xFF800000> : vector<8xf32>
    %18 = vector.multi_reduction <maximumf>, %17, %cst_13 [1] : vector<8x8xf32> to vector<8xf32>
    %19 = vector.shape_cast %18 : vector<8xf32> to vector<8x1xf32>
    %20 = vector.broadcast %19 : vector<8x1xf32> to vector<8x8xf32>
    %21 = arith.subf %17, %20 : vector<8x8xf32>
    %22 = math.exp %21 : vector<8x8xf32>
    %cst_14 = arith.constant dense<0.000000e+00> : vector<8xf32>
    %23 = vector.multi_reduction <add>, %22, %cst_14 [1] : vector<8x8xf32> to vector<8xf32>
    %24 = vector.shape_cast %23 : vector<8xf32> to vector<8x1xf32>
    %25 = tpu.reciprocal %24 {approx = true} : vector<8x1xf32> -> vector<8x1xf32>
    %26 = vector.broadcast %25 : vector<8x1xf32> to vector<8x8xf32>
    %27 = arith.mulf %22, %26 : vector<8x8xf32>
    %28 = arith.truncf %27 : vector<8x8xf32> to vector<8x8xbf16>
    %cst_15 = arith.constant dense<0.000000e+00> : vector<8x8xf32>
    %29 = tpu.matmul %28, %14, %cst_15 {dimension_numbers = #tpu.dot_dimension_numbers<[1], [0], [0], [1], [0, 0, 1, 1], [], []>} : vector<8x8xbf16>, vector<8x8xbf16>, vector<8x8xf32> -> vector<8x8xf32>
    %30 = arith.truncf %29 : vector<8x8xf32> to vector<8x8xbf16>
    %c0_16 = arith.constant 0 : index
    %c0_17 = arith.constant 0 : index
    %31 = vector.load %arg4[%c0_16, %c0_17] : memref<8x32xbf16, #tpu.memory_space<vmem>>, vector<8x8xbf16>
    tpu.vector_store %arg4[%c0_16, %c0_17], %30 {strides = array<i32>} : memref<8x32xbf16, #tpu.memory_space<vmem>>, vector<8x8xbf16>,
    %c0_18 = arith.constant 0 : index
    %c8 = arith.constant 8 : index
    %32 = vector.load %arg5[%c0_18, %c8] : memref<8x96xbf16, #tpu.memory_space<vmem>>, vector<8x8xbf16>
    %c0_19 = arith.constant 0 : index
    %c40 = arith.constant 40 : index
    %33 = vector.load %arg5[%c0_19, %c40] : memref<8x96xbf16, #tpu.memory_space<vmem>>, vector<8x8xbf16>
    %c0_20 = arith.constant 0 : index
    %c72 = arith.constant 72 : index
    %34 = vector.load %arg5[%c0_20, %c72] : memref<8x96xbf16, #tpu.memory_space<vmem>>, vector<8x8xbf16>
    %cst_21 = arith.constant dense<0.000000e+00> : vector<8x8xf32>
    %35 = tpu.matmul %32, %33, %cst_21 {dimension_numbers = #tpu.dot_dimension_numbers<[1], [1], [0], [0], [0, 0, 1, 0], [], []>} : vector<8x8xbf16>, vector<8x8xbf16>, vector<8x8xf32> -> vector<8x8xf32>
    %cst_22 = arith.constant -1.000000e+09 : f32
    %36 = vector.broadcast %cst_22 : f32 to vector<8x8xf32>
    %37 = arith.select %11, %35, %36 : vector<8x8xi1>, vector<8x8xf32>
    %cst_23 = arith.constant dense<0xFF800000> : vector<8xf32>
    %38 = vector.multi_reduction <maximumf>, %37, %cst_23 [1] : vector<8x8xf32> to vector<8xf32>
    %39 = vector.shape_cast %38 : vector<8xf32> to vector<8x1xf32>
    %40 = vector.broadcast %39 : vector<8x1xf32> to vector<8x8xf32>
    %41 = arith.subf %37, %40 : vector<8x8xf32>
    %42 = math.exp %41 : vector<8x8xf32>
    %cst_24 = arith.constant dense<0.000000e+00> : vector<8xf32>
    %43 = vector.multi_reduction <add>, %42, %cst_24 [1] : vector<8x8xf32> to vector<8xf32>
    %44 = vector.shape_cast %43 : vector<8xf32> to vector<8x1xf32>
    %45 = tpu.reciprocal %44 {approx = true} : vector<8x1xf32> -> vector<8x1xf32>
    %46 = vector.broadcast %45 : vector<8x1xf32> to vector<8x8xf32>
    %47 = arith.mulf %42, %46 : vector<8x8xf32>
    %48 = arith.truncf %47 : vector<8x8xf32> to vector<8x8xbf16>
    %cst_25 = arith.constant dense<0.000000e+00> : vector<8x8xf32>
    %49 = tpu.matmul %48, %34, %cst_25 {dimension_numbers = #tpu.dot_dimension_numbers<[1], [0], [0], [1], [0, 0, 1, 1], [], []>} : vector<8x8xbf16>, vector<8x8xbf16>, vector<8x8xf32> -> vector<8x8xf32>
    %50 = arith.truncf %49 : vector<8x8xf32> to vector<8x8xbf16>
    %c0_26 = arith.constant 0 : index
    %c8_27 = arith.constant 8 : index
    %51 = vector.load %arg4[%c0_26, %c8_27] : memref<8x32xbf16, #tpu.memory_space<vmem>>, vector<8x8xbf16>
    tpu.vector_store %arg4[%c0_26, %c8_27], %50 {strides = array<i32>} : memref<8x32xbf16, #tpu.memory_space<vmem>>, vector<8x8xbf16>,
    %c0_28 = arith.constant 0 : index
    %c16 = arith.constant 16 : index
    %52 = vector.load %arg5[%c0_28, %c16] : memref<8x96xbf16, #tpu.memory_space<vmem>>, vector<8x8xbf16>
    %c0_29 = arith.constant 0 : index
    %c48 = arith.constant 48 : index
    %53 = vector.load %arg5[%c0_29, %c48] : memref<8x96xbf16, #tpu.memory_space<vmem>>, vector<8x8xbf16>
    %c0_30 = arith.constant 0 : index
    %c80 = arith.constant 80 : index
    %54 = vector.load %arg5[%c0_30, %c80] : memref<8x96xbf16, #tpu.memory_space<vmem>>, vector<8x8xbf16>
    %cst_31 = arith.constant dense<0.000000e+00> : vector<8x8xf32>
    %55 = tpu.matmul %52, %53, %cst_31 {dimension_numbers = #tpu.dot_dimension_numbers<[1], [1], [0], [0], [0, 0, 1, 0], [], []>} : vector<8x8xbf16>, vector<8x8xbf16>, vector<8x8xf32> -> vector<8x8xf32>
    %cst_32 = arith.constant -1.000000e+09 : f32
    %56 = vector.broadcast %cst_32 : f32 to vector<8x8xf32>
    %57 = arith.select %11, %55, %56 : vector<8x8xi1>, vector<8x8xf32>
    %cst_33 = arith.constant dense<0xFF800000> : vector<8xf32>
    %58 = vector.multi_reduction <maximumf>, %57, %cst_33 [1] : vector<8x8xf32> to vector<8xf32>
    %59 = vector.shape_cast %58 : vector<8xf32> to vector<8x1xf32>
    %60 = vector.broadcast %59 : vector<8x1xf32> to vector<8x8xf32>
    %61 = arith.subf %57, %60 : vector<8x8xf32>
    %62 = math.exp %61 : vector<8x8xf32>
    %cst_34 = arith.constant dense<0.000000e+00> : vector<8xf32>
    %63 = vector.multi_reduction <add>, %62, %cst_34 [1] : vector<8x8xf32> to vector<8xf32>
    %64 = vector.shape_cast %63 : vector<8xf32> to vector<8x1xf32>
    %65 = tpu.reciprocal %64 {approx = true} : vector<8x1xf32> -> vector<8x1xf32>
    %66 = vector.broadcast %65 : vector<8x1xf32> to vector<8x8xf32>
    %67 = arith.mulf %62, %66 : vector<8x8xf32>
    %68 = arith.truncf %67 : vector<8x8xf32> to vector<8x8xbf16>
    %cst_35 = arith.constant dense<0.000000e+00> : vector<8x8xf32>
    %69 = tpu.matmul %68, %54, %cst_35 {dimension_numbers = #tpu.dot_dimension_numbers<[1], [0], [0], [1], [0, 0, 1, 1], [], []>} : vector<8x8xbf16>, vector<8x8xbf16>, vector<8x8xf32> -> vector<8x8xf32>
    %70 = arith.truncf %69 : vector<8x8xf32> to vector<8x8xbf16>
    %c0_36 = arith.constant 0 : index
    %c16_37 = arith.constant 16 : index
    %71 = vector.load %arg4[%c0_36, %c16_37] : memref<8x32xbf16, #tpu.memory_space<vmem>>, vector<8x8xbf16>
    tpu.vector_store %arg4[%c0_36, %c16_37], %70 {strides = array<i32>} : memref<8x32xbf16, #tpu.memory_space<vmem>>, vector<8x8xbf16>,
    %c0_38 = arith.constant 0 : index
    %c24 = arith.constant 24 : index
    %72 = vector.load %arg5[%c0_38, %c24] : memref<8x96xbf16, #tpu.memory_space<vmem>>, vector<8x8xbf16>
    %c0_39 = arith.constant 0 : index
    %c56 = arith.constant 56 : index
    %73 = vector.load %arg5[%c0_39, %c56] : memref<8x96xbf16, #tpu.memory_space<vmem>>, vector<8x8xbf16>
    %c0_40 = arith.constant 0 : index
    %c88 = arith.constant 88 : index
    %74 = vector.load %arg5[%c0_40, %c88] : memref<8x96xbf16, #tpu.memory_space<vmem>>, vector<8x8xbf16>
    %cst_41 = arith.constant dense<0.000000e+00> : vector<8x8xf32>
    %75 = tpu.matmul %72, %73, %cst_41 {dimension_numbers = #tpu.dot_dimension_numbers<[1], [1], [0], [0], [0, 0, 1, 0], [], []>} : vector<8x8xbf16>, vector<8x8xbf16>, vector<8x8xf32> -> vector<8x8xf32>
    %cst_42 = arith.constant -1.000000e+09 : f32
    %76 = vector.broadcast %cst_42 : f32 to vector<8x8xf32>
    %77 = arith.select %11, %75, %76 : vector<8x8xi1>, vector<8x8xf32>
    %cst_43 = arith.constant dense<0xFF800000> : vector<8xf32>
    %78 = vector.multi_reduction <maximumf>, %77, %cst_43 [1] : vector<8x8xf32> to vector<8xf32>
    %79 = vector.shape_cast %78 : vector<8xf32> to vector<8x1xf32>
    %80 = vector.broadcast %79 : vector<8x1xf32> to vector<8x8xf32>
    %81 = arith.subf %77, %80 : vector<8x8xf32>
    %82 = math.exp %81 : vector<8x8xf32>
    %cst_44 = arith.constant dense<0.000000e+00> : vector<8xf32>
    %83 = vector.multi_reduction <add>, %82, %cst_44 [1] : vector<8x8xf32> to vector<8xf32>
    %84 = vector.shape_cast %83 : vector<8xf32> to vector<8x1xf32>
    %85 = tpu.reciprocal %84 {approx = true} : vector<8x1xf32> -> vector<8x1xf32>
    %86 = vector.broadcast %85 : vector<8x1xf32> to vector<8x8xf32>
    %87 = arith.mulf %82, %86 : vector<8x8xf32>
    %88 = arith.truncf %87 : vector<8x8xf32> to vector<8x8xbf16>
    %cst_45 = arith.constant dense<0.000000e+00> : vector<8x8xf32>
    %89 = tpu.matmul %88, %74, %cst_45 {dimension_numbers = #tpu.dot_dimension_numbers<[1], [0], [0], [1], [0, 0, 1, 1], [], []>} : vector<8x8xbf16>, vector<8x8xbf16>, vector<8x8xf32> -> vector<8x8xf32>
    %90 = arith.truncf %89 : vector<8x8xf32> to vector<8x8xbf16>
    %c0_46 = arith.constant 0 : index
    %c24_47 = arith.constant 24 : index
    %91 = vector.load %arg4[%c0_46, %c24_47] : memref<8x32xbf16, #tpu.memory_space<vmem>>, vector<8x8xbf16>
    tpu.vector_store %arg4[%c0_46, %c24_47], %90 {strides = array<i32>} : memref<8x32xbf16, #tpu.memory_space<vmem>>, vector<8x8xbf16>,
    return
  }
  func.func @transform_0(%arg0: i32) -> (i32, i32) {
    %c0_i32 = arith.constant 0 : i32
    %c0_i32_0 = arith.constant 0 : i32
    return %arg0, %c0_i32 : i32, i32
  }
  func.func @transform_1(%arg0: i32) -> (i32, i32) {
    %c0_i32 = arith.constant 0 : i32
    %c0_i32_0 = arith.constant 0 : i32
    %c0_i32_1 = arith.constant 0 : i32
    return %c0_i32, %c0_i32_0 : i32, i32
  }
  func.func @transform_2(%arg0: i32) -> (i32, i32) {
    %c0_i32 = arith.constant 0 : i32
    %c0_i32_0 = arith.constant 0 : i32
    %c0_i32_1 = arith.constant 0 : i32
    return %c0_i32, %c0_i32_0 : i32, i32
  }
  func.func @transform_3(%arg0: i32) -> (i32, i32) {
    %c0_i32 = arith.constant 0 : i32
    %c0_i32_0 = arith.constant 0 : i32
    return %arg0, %c0_i32 : i32, i32
  }
}

</mosaic_0001>

<llo_original>
// kernel: tpu_custom_call.1
$region0: #{tpu_custom_call.1}
  #allocation0 [shape = 'u32[]', space=smem, size = 0x4, offset = 0x4, fixed_abs, tag = 'smem constant byte address 0x4 - core index']
  #allocation1 [shape = 'u32[144,128]{1,0:T(1,128)}', space=vmem, size = 0x12000, scoped, tag = 'internal scratch']
  #allocation2 [shape = 'bf16[8,96]{1,0:T(8,128)(2,1)}', space=vmem, size = 0x800, scoped, tag = 'scratch operand']
  %s0 = inlined_call_operand.hbm [shape: f32[16,32], index: 0, kind: input, shape index: {}]
  %s1 = inlined_call_operand.hbm [shape: bf16[32,96], index: 1, kind: input, shape index: {}]
  %s2 = inlined_call_operand.vmem [shape: f32[1,96], index: 2, kind: input, shape index: {}]
  %s3 = inlined_call_operand.hbm [shape: bf16[16,32], index: 3, kind: output, shape index: {}]
  %s4 = sld [smem:[#allocation0]]
  $region53: #{tpu_custom_call.1} parent=0
    _
  %s6 = ssub.s32 1, %s4
  %s7 = scalar_select 0, %s6, %s4
  $region1: #{tpu_custom_call.1} parent=0
    #allocation3 [shape = 'u8[8192]{0}', space=vmem, size = 0x2000, scoped, tag = 'input window, operand 0']
    #allocation4 [shape = 's32[2]{0}', space=sflag, size = 0x8, scoped, tag = 'scoped memory for tpu_custom_call.1']
    #allocation5 [shape = 's32[2]{0}', space=sflag, size = 0x8, scoped, tag = 'scoped memory for tpu_custom_call.1']
    #allocation6 [shape = 'u8[8192]{0}', space=vmem, size = 0x2000, scoped, tag = 'input window, operand 1, single buffered']
    #allocation7 [shape = 's32[1]{0}', space=sflag, size = 0x4, scoped, tag = 'scoped memory for tpu_custom_call.1']
    #allocation8 [shape = 'u8[4096]{0}', space=vmem, size = 0x1000, scoped, tag = 'output window, operand 0']
    %8 = vsyncpa [#allocation4], 0
    %s9 = scalar_lea.sflag [#allocation4], 1
    %10 = vsyncpa %s9, 0
    %11 = vsyncpa [#allocation7], 0
    %12 = vsyncpa [#allocation5], 0
    %s13 = scalar_lea.sflag [#allocation5], 1
    %14 = vsyncpa %s13, 0
    loop: start=0, step=1, limit=4
    $region2: #{tpu_custom_call.1} parent=1 // loop_pre_header
      _
    $region3: #{tpu_custom_call.1} parent=1 // loop_header
      %s16 = sphi 0, %s20
      %p17 = scmp.ge.s32.totalorder %s16, 4
      %s26 = sphi 0, %s28
      %s29 = sphi 0, %s26
      %s30 = sphi 0, %s29
      %s46 = sphi 0, %s30
      %s50 = sphi 0, %s50
      %s52 = sphi 0, %s50
      %s53 = sphi 0, %s52
      %s67 = sphi 0, %s53
      %s71 = sphi 0, %s71
      %s73 = sphi 0, %s71
      %s74 = sphi 0, %s73
      %s88 = sphi 0, %s74
      %s94 = sphi 0, %s96
      %s97 = sphi 0, %s94
      %s98 = sphi 0, %s97
      %s114 = sphi 0, %s98
    $region4: #{tpu_custom_call.1} parent=1 // loop_header_branch
      %19 = sbr.rel (%p17) target = $region8
    $region5: #{tpu_custom_call.1} parent=1 // loop_body
      %s21 = ssub.s32 %s16, 1
      %s22 = ssub.s32 %s16, 2
      %s23 = sadd.s32 %s16, 1
      %s24 = ssub.s32 %s16, %s23
      %p25 = scmp.eq.s32.totalorder %s24, 0
      %s27 = sadd.s32 %s26, 1
      %s28 = scalar_select %p25, %s26, %s27
      %p31 = pneg %p25
      %p32 = scmp.eq.s32.totalorder %s16, 1
      %p33 = por %p31, %p32
      %p34 = scmp.ne.s32.totalorder %s26, %s29
      %p35 = scmp.eq.s32.totalorder %s16, 0
      %p36 = por %p34, %p35
      %p37 = scmp.ne.s32.totalorder %s26, %s29
      %p38 = scmp.eq.s32.totalorder %s21, 1
      %p39 = por %p37, %p38
      %p40 = scmp.ne.s32.totalorder %s29, %s30
      %p41 = scmp.eq.s32.totalorder %s21, 0
      %p42 = por %p40, %p41
      %p43 = scmp.ne.s32.totalorder %s29, %s30
      %p44 = scmp.eq.s32.totalorder %s22, 1
      %p45 = por %p43, %p44
      %p47 = scmp.ne.s32.totalorder %s30, %s46
      %p48 = scmp.eq.s32.totalorder %s22, 0
      %p49 = por %p47, %p48
      %s51 = sadd.s32 %s50, 1
      %p54 = scmp.eq.s32.totalorder %s16, 1
      %p55 = scmp.ne.s32.totalorder %s50, %s52
      %p56 = scmp.eq.s32.totalorder %s16, 0
      %p57 = por %p55, %p56
      %p58 = scmp.ne.s32.totalorder %s50, %s52
      %p59 = scmp.eq.s32.totalorder %s21, 1
      %p60 = por %p58, %p59
      %p61 = scmp.ne.s32.totalorder %s52, %s53
      %p62 = scmp.eq.s32.totalorder %s21, 0
      %p63 = por %p61, %p62
      %p64 = scmp.ne.s32.totalorder %s52, %s53
      %p65 = scmp.eq.s32.totalorder %s22, 1
      %p66 = por %p64, %p65
      %p68 = scmp.ne.s32.totalorder %s53, %s67
      %p69 = scmp.eq.s32.totalorder %s22, 0
      %p70 = por %p68, %p69
      %s72 = sadd.s32 %s71, 1
      %p75 = scmp.eq.s32.totalorder %s16, 1
      %p76 = scmp.ne.s32.totalorder %s71, %s73
      %p77 = scmp.eq.s32.totalorder %s16, 0
      %p78 = por %p76, %p77
      %p79 = scmp.ne.s32.totalorder %s71, %s73
      %p80 = scmp.eq.s32.totalorder %s21, 1
      %p81 = por %p79, %p80
      %p82 = scmp.ne.s32.totalorder %s73, %s74
      %p83 = scmp.eq.s32.totalorder %s21, 0
      %p84 = por %p82, %p83
      %p85 = scmp.ne.s32.totalorder %s73, %s74
      %p86 = scmp.eq.s32.totalorder %s22, 1
      %p87 = por %p85, %p86
      %p89 = scmp.ne.s32.totalorder %s74, %s88
      %p90 = scmp.eq.s32.totalorder %s22, 0
      %p91 = por %p89, %p90
      %s92 = ssub.s32 %s16, %s23
      %p93 = scmp.eq.s32.totalorder %s92, 0
      %s95 = sadd.s32 %s94, 1
      %s96 = scalar_select %p93, %s94, %s95
      %p99 = pneg %p93
      %p100 = scmp.eq.s32.totalorder %s16, 1
      %p101 = por %p99, %p100
      %p102 = scmp.ne.s32.totalorder %s94, %s97
      %p103 = scmp.eq.s32.totalorder %s16, 0
      %p104 = por %p102, %p103
      %p105 = scmp.ne.s32.totalorder %s94, %s97
      %p106 = scmp.eq.s32.totalorder %s21, 1
      %p107 = por %p105, %p106
      %p108 = scmp.ne.s32.totalorder %s97, %s98
      %p109 = scmp.eq.s32.totalorder %s21, 0
      %p110 = por %p108, %p109
      %p111 = scmp.ne.s32.totalorder %s97, %s98
      %p112 = scmp.eq.s32.totalorder %s22, 1
      %p113 = por %p111, %p112
      %p115 = scmp.ne.s32.totalorder %s98, %s114
      %p116 = scmp.eq.s32.totalorder %s22, 0
      %p117 = por %p115, %p116
      %p118 = scmp.le.s32.totalorder 1, %s16
      %p119 = scmp.lt.s32.totalorder %s16, 3
      %p120 = pnand %p118, %p119
      %p121 = pneg %p120
      // Predicated region
      $region9: #{tpu_custom_call.1} parent=5 // pred_check
        _
      $region10: #{tpu_custom_call.1} parent=5 // pred_check_branch
        %123 = sbr.rel (%p120) target = $region12
      $region11: #{tpu_custom_call.1} parent=5 // pred_region
        %s124 = ssub.s32 %s16, 1
        // Predicated region
        $region13: #{tpu_custom_call.1} parent=11 // pred_check
          %p125 = pneg %p63
        $region14: #{tpu_custom_call.1} parent=11 // pred_check_branch
          %127 = sbr.rel (%p125) target = $region16
        $region15: #{tpu_custom_call.1} parent=11 // pred_region
          %s129 = ssub.s32 256, 256
          %130 = vsyncadd [#allocation7], %s129
          %s131 = sshll.u32 [#allocation6], 4
          %s132 = int_to_ptr.vmem [resolvable:$true] %s131
          %137 = dma.hbm_to_vmem [thread:$0]  %s1, 256, %s132, [#allocation7], 64, 64, 4
        $region16: #{tpu_custom_call.1} parent=11 // pred_fallthru
          _
        // Predicated region
        $region17: #{tpu_custom_call.1} parent=11 // pred_check
          %p138 = pneg %p84
        $region18: #{tpu_custom_call.1} parent=11 // pred_check_branch
          %140 = sbr.rel (%p138) target = $region20
        $region19: #{tpu_custom_call.1} parent=11 // pred_region
          _
        $region20: #{tpu_custom_call.1} parent=11 // pred_fallthru
          _
      $region12: #{tpu_custom_call.1} parent=5 // pred_fallthru
        _
      %p141 = scmp.lt.s32.totalorder %s16, 2
      // Predicated region
      $region21: #{tpu_custom_call.1} parent=5 // pred_check
        %p142 = pneg %p141
      $region22: #{tpu_custom_call.1} parent=5 // pred_check_branch
        %144 = sbr.rel (%p142) target = $region24
      $region23: #{tpu_custom_call.1} parent=5 // pred_region
        // Predicated region
        $region25: #{tpu_custom_call.1} parent=23 // pred_check
          %p145 = pneg %p36
        $region26: #{tpu_custom_call.1} parent=23 // pred_check_branch
          %147 = sbr.rel (%p145) target = $region28
        $region27: #{tpu_custom_call.1} parent=23 // pred_region
          %s148 = sand.u32 %s26, 1
          %s149 = scalar_lea.sflag [#allocation4], %s148
          %s150 = sand.u32 %s26, 1
          %s151 = smul.addr %s150, 8
          %s152 = scalar_lea.vmem [#allocation3], %s151
          %s154 = ssub.s32 128, 128
          %155 = vsyncadd %s149, %s154
          %s156 = smul.addr %s16, 128
          %s157 = scalar_lea.hbm %s0, %s156
          %s159 = sshll.u32 %s152, 4
          %s160 = int_to_ptr.vmem [resolvable:$true] %s159
          %162 = dma.hbm_to_vmem [thread:$0]  %s157, 128, %s160, %s149
        $region28: #{tpu_custom_call.1} parent=23 // pred_fallthru
          _
      $region24: #{tpu_custom_call.1} parent=5 // pred_fallthru
        _
      %p163 = scmp.le.s32.totalorder 1, %s16
      %p164 = scmp.lt.s32.totalorder %s16, 3
      %p165 = pnand %p163, %p164
      %p166 = pneg %p165
      // Predicated region
      $region29: #{tpu_custom_call.1} parent=5 // pred_check
        _
      $region30: #{tpu_custom_call.1} parent=5 // pred_check_branch
        %168 = sbr.rel (%p165) target = $region32
      $region31: #{tpu_custom_call.1} parent=5 // pred_region
        %s169 = ssub.s32 %s16, 1
        %s170 = sand.u32 %s29, 1
        %s171 = scalar_lea.sflag [#allocation4], %s170
        %s172 = sand.u32 %s29, 1
        %s173 = smul.addr %s172, 8
        %s174 = scalar_lea.vmem [#allocation3], %s173
        // Predicated region
        $region33: #{tpu_custom_call.1} parent=31 // pred_check
          %p175 = pneg %p42
        $region34: #{tpu_custom_call.1} parent=31 // pred_check_branch
          %177 = sbr.rel (%p175) target = $region36
        $region35: #{tpu_custom_call.1} parent=31 // pred_region
          %178 = dma.done %s171, 128
        $region36: #{tpu_custom_call.1} parent=31 // pred_fallthru
          _
        // Predicated region
        $region37: #{tpu_custom_call.1} parent=31 // pred_check
          %p179 = pneg %p63
        $region38: #{tpu_custom_call.1} parent=31 // pred_check_branch
          %181 = sbr.rel (%p179) target = $region40
        $region39: #{tpu_custom_call.1} parent=31 // pred_region
          %182 = dma.done [#allocation7], 256
        $region40: #{tpu_custom_call.1} parent=31 // pred_fallthru
          _
        %s183 = sand.u32 %s29, 1
        %s184 = scalar_lea.sflag [#allocation4], %s183
        %s185 = sand.u32 %s29, 1
        %s186 = smul.addr %s185, 8
        %s187 = scalar_lea.vmem [#allocation3], %s186
        %p188 = pneg %p42
        %p189 = pneg %p39
        %p190 = pneg %p63
        %p191 = pneg %p60
        %p192 = pneg %p84
        %p193 = pneg %p81
        %p194 = pneg %p110
        %p195 = pneg %p107
        %s196 = sand.u32 %s97, 1
        %s197 = scalar_lea.sflag [#allocation5], %s196
        %s198 = sand.u32 %s97, 1
        %s199 = smul.addr %s198, 4
        %s200 = scalar_lea.vmem [#allocation8], %s199
        %v202 = vld [vmem:[%s174] sm:$0xff]
        %v203 = vpack.c.bf16 %v202, %v202
        %v204 = vld [vmem:[#allocation6] sm:$0xf]
        %v205 = vld [vmem:[#allocation6 + $0x4] sm:$0xf]
        %v206 = vld [vmem:[#allocation6 + $0x8] sm:$0xf]
        %v207 = vld [vmem:[#allocation6 + $0xc] sm:$0xf]
        %v208 = vld [vmem:[%s2] sm:$0x1]
        %v210 = vlaneseq
        %v211 = vshrl.u32 %v210, 7
        %v212 = vsub.s32 0, %v211
        %v213 = vrot.slane %v208, %v212
        %v219 = vunpack.c.l.b16 %v204
        %v220 = vunpack.c.l.b16 %v205
        %v221 = vunpack.c.l.b16 %v206
        %v222 = vunpack.c.l.b16 %v207
        %v223 = vpack.c.b16 %v220, %v219
        %v224 = vpack.c.b16 %v222, %v221
        %vm227 = vcmask 261120
        %v229 = vsel %vm227, %v203, 0
        %231 = vmatprep.subr.bf16.mxu0 0
        %232 = vmatpush1.bf16.msra.mxu0 %v223
        %233 = vmatprep.subr.bf16.mxu0 0
        %234 = vmatpush1.bf16.msra.mxu0 %v224
        %235 = vmatprep.subr.bf16.mxu0 0
        %236 = vmatpush1.bf16.msra.mxu0 0
        %237 = vmatprep.subr.bf16.mxu0 0
        %238 = vmatpush1.bf16.msra.mxu0 0
        %239 = vmatprep.subr.bf16.mxu0 0
        %240 = vmatpush1.bf16.msra.mxu0 0
        %241 = vmatprep.subr.bf16.mxu0 0
        %242 = vmatpush1.bf16.msra.mxu0 0
        %243 = vmatprep.subr.bf16.mxu0 0
        %244 = vmatpush1.bf16.msra.mxu0 0
        %245 = vmatprep.subr.bf16.mxu0 0
        %246 = vmatpush1.bf16.msra.mxu0 0
        %247 = vmatprep.subr.bf16.mxu0 0
        %248 = vmatpush1.bf16.msra.mxu0 0
        %249 = vmatprep.subr.bf16.mxu0 0
        %250 = vmatpush1.bf16.msra.mxu0 0
        %251 = vmatprep.subr.bf16.mxu0 0
        %252 = vmatpush1.bf16.msra.mxu0 0
        %253 = vmatprep.subr.bf16.mxu0 0
        %254 = vmatpush1.bf16.msra.mxu0 0
        %255 = vmatprep.subr.bf16.mxu0 0
        %256 = vmatpush1.bf16.msra.mxu0 0
        %257 = vmatprep.subr.bf16.mxu0 0
        %258 = vmatpush1.bf16.msra.mxu0 0
        %259 = vmatprep.subr.bf16.mxu0 0
        %260 = vmatpush1.bf16.msra.mxu0 0
        %261 = vmatprep.subr.bf16.mxu0 0
        %262 = vmatpush1.bf16.msra.mxu0 0
        %263 = vmatprep.mubr.bf16.mxu0 0
        %264 = vmatmul.mubr.bf16.gmra.mrb[0].mxu0 %v229
        %v265 = vpop.f32.mrb[0].mxu0
        %v266 = vadd.f32 %v213, %v265
        %v267 = vpop.f32.mrb[0].mxu0
        %v268 = vpop.f32.mrb[0].mxu0
        %v269 = vpop.f32.mrb[0].mxu0
        %270 = vdwg.mxu0
        %v271 = vpack.c.bf16 %v266, %v266
        %vm272 = vcmask 781312
        %273 = vst.msk [vmem:[#allocation2] sm:$0xf] %vm272, %v271
        %v274 = vlaneseq
        %v275 = vshrl.u32 %v274, 7
        %v276 = vlaneseq
        %v277 = vand.u32 %v276, 127
        %vm278 = vcmp.ge.s32.totalorder %v275, %v277
        %v279 = vld [vmem:[#allocation2] sm:$0xf]
        %v281 = vunpack.c.l.b16 %v279
        %v282 = vpack.c.b16 %v281, %v281
        %283 = vrot.lane.b32.xlu0 %v282, 96
        %v284 = vpop.permute.xlu0 %283
        %vm285 = vcmask 64512
        %v287 = vsel %vm285, %v279, 0
        %v290 = vsel %vm285, %v284, 0
        %292 = vmatprep.subr.bf16.mxu0 0
        %293 = vmatpush1.bf16.xpose.msra.mxu0 %v290
        %294 = vmatprep.subr.bf16.mxu0 0
        %295 = vmatpush1.bf16.xpose.msra.mxu0 0
        %296 = vmatprep.subr.bf16.mxu0 0
        %297 = vmatpush1.bf16.xpose.msra.mxu0 0
        %298 = vmatprep.subr.bf16.mxu0 0
        %299 = vmatpush1.bf16.xpose.msra.mxu0 0
        %300 = vmatprep.subr.bf16.mxu0 0
        %301 = vmatpush1.bf16.xpose.msra.mxu0 0
        %302 = vmatprep.subr.bf16.mxu0 0
        %303 = vmatpush1.bf16.xpose.msra.mxu0 0
        %304 = vmatprep.subr.bf16.mxu0 0
        %305 = vmatpush1.bf16.xpose.msra.mxu0 0
        %306 = vmatprep.subr.bf16.mxu0 0
        %307 = vmatpush1.bf16.xpose.msra.mxu0 0
        %308 = vmatprep.subr.bf16.mxu0 0
        %309 = vmatpush1.bf16.xpose.msra.mxu0 0
        %310 = vmatprep.subr.bf16.mxu0 0
        %311 = vmatpush1.bf16.xpose.msra.mxu0 0
        %312 = vmatprep.subr.bf16.mxu0 0
        %313 = vmatpush1.bf16.xpose.msra.mxu0 0
        %314 = vmatprep.subr.bf16.mxu0 0
        %315 = vmatpush1.bf16.xpose.msra.mxu0 0
        %316 = vmatprep.subr.bf16.mxu0 0
        %317 = vmatpush1.bf16.xpose.msra.mxu0 0
        %318 = vmatprep.subr.bf16.mxu0 0
        %319 = vmatpush1.bf16.xpose.msra.mxu0 0
        %320 = vmatprep.subr.bf16.mxu0 0
        %321 = vmatpush1.bf16.xpose.msra.mxu0 0
        %322 = vmatprep.subr.bf16.mxu0 0
        %323 = vmatpush1.bf16.xpose.msra.mxu0 0
        %324 = vmatprep.mubr.bf16.mxu0 0
        %325 = vmatmul.mubr.bf16.gmra.mrb[0].mxu0 %v287
        %v326 = vpop.f32.mrb[0].mxu0
        %v327 = vadd.f32 0.0, %v326
        %v328 = vpop.f32.mrb[0].mxu0
        %v329 = vpop.f32.mrb[0].mxu0
        %v330 = vpop.f32.mrb[0].mxu0
        %331 = vdwg.mxu0
        %v332 = vsel %vm278, %v327, -1e+09
        %v333 = vsel %vm285, %v332, -inf
        %334 = vmax.xlane.f32.xlu0 %v333
        %v335 = vpop.xlane.xlu0 %334
        %v336 = vsub.f32 %v332, %v335
        %v337 = vmul.f32 %v336, 1.442695
        %v338 = vpow.pop %v337
        %v339 = vsel %vm285, %v338, 0.0
        %340 = vadd.xlane.f32.xlu0 %v339
        %v341 = vpop.xlane.xlu0 %340
        %v342 = vrcp.pop %v341
        %v343 = vmul.f32 %v338, %v342
        %v344 = vpack.c.bf16 %v343, %v343
        %345 = vrot.lane.b32.xlu0 %v282, 64
        %v346 = vpop.permute.xlu0 %345
        %v348 = vsel %vm285, %v344, 0
        %vm350 = vcmask 1043456
        %v352 = vsel %vm350, %v346, 0
        %354 = vmatprep.subr.bf16.mxu0 0
        %355 = vmatpush1.bf16.msra.mxu0 %v352
        %356 = vmatprep.subr.bf16.mxu0 0
        %357 = vmatpush1.bf16.msra.mxu0 0
        %358 = vmatprep.subr.bf16.mxu0 0
        %359 = vmatpush1.bf16.msra.mxu0 0
        %360 = vmatprep.subr.bf16.mxu0 0
        %361 = vmatpush1.bf16.msra.mxu0 0
        %362 = vmatprep.subr.bf16.mxu0 0
        %363 = vmatpush1.bf16.msra.mxu0 0
        %364 = vmatprep.subr.bf16.mxu0 0
        %365 = vmatpush1.bf16.msra.mxu0 0
        %366 = vmatprep.subr.bf16.mxu0 0
        %367 = vmatpush1.bf16.msra.mxu0 0
        %368 = vmatprep.subr.bf16.mxu0 0
        %369 = vmatpush1.bf16.msra.mxu0 0
        %370 = vmatprep.subr.bf16.mxu0 0
        %371 = vmatpush1.bf16.msra.mxu0 0
        %372 = vmatprep.subr.bf16.mxu0 0
        %373 = vmatpush1.bf16.msra.mxu0 0
        %374 = vmatprep.subr.bf16.mxu0 0
        %375 = vmatpush1.bf16.msra.mxu0 0
        %376 = vmatprep.subr.bf16.mxu0 0
        %377 = vmatpush1.bf16.msra.mxu0 0
        %378 = vmatprep.subr.bf16.mxu0 0
        %379 = vmatpush1.bf16.msra.mxu0 0
        %380 = vmatprep.subr.bf16.mxu0 0
        %381 = vmatpush1.bf16.msra.mxu0 0
        %382 = vmatprep.subr.bf16.mxu0 0
        %383 = vmatpush1.bf16.msra.mxu0 0
        %384 = vmatprep.subr.bf16.mxu0 0
        %385 = vmatpush1.bf16.msra.mxu0 0
        %386 = vmatprep.mubr.bf16.mxu0 0
        %387 = vmatmul.mubr.bf16.gmra.mrb[0].mxu0 %v348
        %v388 = vpop.f32.mrb[0].mxu0
        %v389 = vadd.f32 0.0, %v388
        %v390 = vpop.f32.mrb[0].mxu0
        %v391 = vpop.f32.mrb[0].mxu0
        %v392 = vpop.f32.mrb[0].mxu0
        %393 = vdwg.mxu0
        %v394 = vpack.c.bf16 %v389, %v389
        %vm395 = vcmask 60416
        %396 = vst.msk [vmem:[%s200] sm:$0xf] %vm395, %v394
        %v397 = vld [vmem:[#allocation2] sm:$0xf]
        %v399 = vunpack.c.l.b16 %v397
        %v400 = vpack.c.b16 %v399, %v399
        %401 = vrot.lane.b32.xlu0 %v400, 120
        %v402 = vpop.permute.xlu0 %401
        %403 = vrot.lane.b32.xlu0 %v400, 88
        %v404 = vpop.permute.xlu0 %403
        %v406 = vsel %vm285, %v402, 0
        %v409 = vsel %vm285, %v404, 0
        %411 = vmatprep.subr.bf16.mxu0 0
        %412 = vmatpush1.bf16.xpose.msra.mxu0 %v409
        %413 = vmatprep.subr.bf16.mxu0 0
        %414 = vmatpush1.bf16.xpose.msra.mxu0 0
        %415 = vmatprep.subr.bf16.mxu0 0
        %416 = vmatpush1.bf16.xpose.msra.mxu0 0
        %417 = vmatprep.subr.bf16.mxu0 0
        %418 = vmatpush1.bf16.xpose.msra.mxu0 0
        %419 = vmatprep.subr.bf16.mxu0 0
        %420 = vmatpush1.bf16.xpose.msra.mxu0 0
        %421 = vmatprep.subr.bf16.mxu0 0
        %422 = vmatpush1.bf16.xpose.msra.mxu0 0
        %423 = vmatprep.subr.bf16.mxu0 0
        %424 = vmatpush1.bf16.xpose.msra.mxu0 0
        %425 = vmatprep.subr.bf16.mxu0 0
        %426 = vmatpush1.bf16.xpose.msra.mxu0 0
        %427 = vmatprep.subr.bf16.mxu0 0
        %428 = vmatpush1.bf16.xpose.msra.mxu0 0
        %429 = vmatprep.subr.bf16.mxu0 0
        %430 = vmatpush1.bf16.xpose.msra.mxu0 0
        %431 = vmatprep.subr.bf16.mxu0 0
        %432 = vmatpush1.bf16.xpose.msra.mxu0 0
        %433 = vmatprep.subr.bf16.mxu0 0
        %434 = vmatpush1.bf16.xpose.msra.mxu0 0
        %435 = vmatprep.subr.bf16.mxu0 0
        %436 = vmatpush1.bf16.xpose.msra.mxu0 0
        %437 = vmatprep.subr.bf16.mxu0 0
        %438 = vmatpush1.bf16.xpose.msra.mxu0 0
        %439 = vmatprep.subr.bf16.mxu0 0
        %440 = vmatpush1.bf16.xpose.msra.mxu0 0
        %441 = vmatprep.subr.bf16.mxu0 0
        %442 = vmatpush1.bf16.xpose.msra.mxu0 0
        %443 = vmatprep.mubr.bf16.mxu0 0
        %444 = vmatmul.mubr.bf16.gmra.mrb[0].mxu0 %v406
        %v445 = vpop.f32.mrb[0].mxu0
        %v446 = vadd.f32 0.0, %v445
        %v447 = vpop.f32.mrb[0].mxu0
        %v448 = vpop.f32.mrb[0].mxu0
        %v449 = vpop.f32.mrb[0].mxu0
        %450 = vdwg.mxu0
        %v451 = vsel %vm278, %v446, -1e+09
        %v452 = vsel %vm285, %v451, -inf
        %453 = vmax.xlane.f32.xlu0 %v452
        %v454 = vpop.xlane.xlu0 %453
        %v455 = vsub.f32 %v451, %v454
        %v456 = vmul.f32 %v455, 1.442695
        %v457 = vpow.pop %v456
        %v458 = vsel %vm285, %v457, 0.0
        %459 = vadd.xlane.f32.xlu0 %v458
        %v460 = vpop.xlane.xlu0 %459
        %v461 = vrcp.pop %v460
        %v462 = vmul.f32 %v457, %v461
        %v463 = vpack.c.bf16 %v462, %v462
        %464 = vrot.lane.b32.xlu0 %v400, 56
        %v465 = vpop.permute.xlu0 %464
        %v467 = vsel %vm285, %v463, 0
        %v470 = vsel %vm350, %v465, 0
        %472 = vmatprep.subr.bf16.mxu0 0
        %473 = vmatpush1.bf16.msra.mxu0 %v470
        %474 = vmatprep.subr.bf16.mxu0 0
        %475 = vmatpush1.bf16.msra.mxu0 0
        %476 = vmatprep.subr.bf16.mxu0 0
        %477 = vmatpush1.bf16.msra.mxu0 0
        %478 = vmatprep.subr.bf16.mxu0 0
        %479 = vmatpush1.bf16.msra.mxu0 0
        %480 = vmatprep.subr.bf16.mxu0 0
        %481 = vmatpush1.bf16.msra.mxu0 0
        %482 = vmatprep.subr.bf16.mxu0 0
        %483 = vmatpush1.bf16.msra.mxu0 0
        %484 = vmatprep.subr.bf16.mxu0 0
        %485 = vmatpush1.bf16.msra.mxu0 0
        %486 = vmatprep.subr.bf16.mxu0 0
        %487 = vmatpush1.bf16.msra.mxu0 0
        %488 = vmatprep.subr.bf16.mxu0 0
        %489 = vmatpush1.bf16.msra.mxu0 0
        %490 = vmatprep.subr.bf16.mxu0 0
        %491 = vmatpush1.bf16.msra.mxu0 0
        %492 = vmatprep.subr.bf16.mxu0 0
        %493 = vmatpush1.bf16.msra.mxu0 0
        %494 = vmatprep.subr.bf16.mxu0 0
        %495 = vmatpush1.bf16.msra.mxu0 0
        %496 = vmatprep.subr.bf16.mxu0 0
        %497 = vmatpush1.bf16.msra.mxu0 0
        %498 = vmatprep.subr.bf16.mxu0 0
        %499 = vmatpush1.bf16.msra.mxu0 0
        %500 = vmatprep.subr.bf16.mxu0 0
        %501 = vmatpush1.bf16.msra.mxu0 0
        %502 = vmatprep.subr.bf16.mxu0 0
        %503 = vmatpush1.bf16.msra.mxu0 0
        %504 = vmatprep.mubr.bf16.mxu0 0
        %505 = vmatmul.mubr.bf16.gmra.mrb[0].mxu0 %v467
        %v506 = vpop.f32.mrb[0].mxu0
        %v507 = vadd.f32 0.0, %v506
        %v508 = vpop.f32.mrb[0].mxu0
        %v509 = vpop.f32.mrb[0].mxu0
        %v510 = vpop.f32.mrb[0].mxu0
        %511 = vdwg.mxu0
        %v512 = vpack.c.bf16 %v507, %v507
        %v514 = vunpack.c.l.b16 %v512
        %v515 = vpack.c.b16 %v514, %v514
        %516 = vrot.lane.b32.xlu0 %v515, 8
        %v517 = vpop.permute.xlu0 %516
        %vm519 = vcmask 126016
        %520 = vst.msk [vmem:[%s200] sm:$0xf] %vm519, %v517
        %v521 = vld [vmem:[#allocation2] sm:$0xf]
        %v523 = vunpack.c.l.b16 %v521
        %v524 = vpack.c.b16 %v523, %v523
        %525 = vrot.lane.b32.xlu0 %v524, 112
        %v526 = vpop.permute.xlu0 %525
        %527 = vrot.lane.b32.xlu0 %v524, 80
        %v528 = vpop.permute.xlu0 %527
        %v530 = vsel %vm285, %v526, 0
        %v533 = vsel %vm285, %v528, 0
        %535 = vmatprep.subr.bf16.mxu0 0
        %536 = vmatpush1.bf16.xpose.msra.mxu0 %v533
        %537 = vmatprep.subr.bf16.mxu0 0
        %538 = vmatpush1.bf16.xpose.msra.mxu0 0
        %539 = vmatprep.subr.bf16.mxu0 0
        %540 = vmatpush1.bf16.xpose.msra.mxu0 0
        %541 = vmatprep.subr.bf16.mxu0 0
        %542 = vmatpush1.bf16.xpose.msra.mxu0 0
        %543 = vmatprep.subr.bf16.mxu0 0
        %544 = vmatpush1.bf16.xpose.msra.mxu0 0
        %545 = vmatprep.subr.bf16.mxu0 0
        %546 = vmatpush1.bf16.xpose.msra.mxu0 0
        %547 = vmatprep.subr.bf16.mxu0 0
        %548 = vmatpush1.bf16.xpose.msra.mxu0 0
        %549 = vmatprep.subr.bf16.mxu0 0
        %550 = vmatpush1.bf16.xpose.msra.mxu0 0
        %551 = vmatprep.subr.bf16.mxu0 0
        %552 = vmatpush1.bf16.xpose.msra.mxu0 0
        %553 = vmatprep.subr.bf16.mxu0 0
        %554 = vmatpush1.bf16.xpose.msra.mxu0 0
        %555 = vmatprep.subr.bf16.mxu0 0
        %556 = vmatpush1.bf16.xpose.msra.mxu0 0
        %557 = vmatprep.subr.bf16.mxu0 0
        %558 = vmatpush1.bf16.xpose.msra.mxu0 0
        %559 = vmatprep.subr.bf16.mxu0 0
        %560 = vmatpush1.bf16.xpose.msra.mxu0 0
        %561 = vmatprep.subr.bf16.mxu0 0
        %562 = vmatpush1.bf16.xpose.msra.mxu0 0
        %563 = vmatprep.subr.bf16.mxu0 0
        %564 = vmatpush1.bf16.xpose.msra.mxu0 0
        %565 = vmatprep.subr.bf16.mxu0 0
        %566 = vmatpush1.bf16.xpose.msra.mxu0 0
        %567 = vmatprep.mubr.bf16.mxu0 0
        %568 = vmatmul.mubr.bf16.gmra.mrb[0].mxu0 %v530
        %v569 = vpop.f32.mrb[0].mxu0
        %v570 = vadd.f32 0.0, %v569
        %v571 = vpop.f32.mrb[0].mxu0
        %v572 = vpop.f32.mrb[0].mxu0
        %v573 = vpop.f32.mrb[0].mxu0
        %574 = vdwg.mxu0
        %v575 = vsel %vm278, %v570, -1e+09
        %v576 = vsel %vm285, %v575, -inf
        %577 = vmax.xlane.f32.xlu0 %v576
        %v578 = vpop.xlane.xlu0 %577
        %v579 = vsub.f32 %v575, %v578
        %v580 = vmul.f32 %v579, 1.442695
        %v581 = vpow.pop %v580
        %v582 = vsel %vm285, %v581, 0.0
        %583 = vadd.xlane.f32.xlu0 %v582
        %v584 = vpop.xlane.xlu0 %583
        %v585 = vrcp.pop %v584
        %v586 = vmul.f32 %v581, %v585
        %v587 = vpack.c.bf16 %v586, %v586
        %588 = vrot.lane.b32.xlu0 %v524, 48
        %v589 = vpop.permute.xlu0 %588
        %v591 = vsel %vm285, %v587, 0
        %v594 = vsel %vm350, %v589, 0
        %596 = vmatprep.subr.bf16.mxu0 0
        %597 = vmatpush1.bf16.msra.mxu0 %v594
        %598 = vmatprep.subr.bf16.mxu0 0
        %599 = vmatpush1.bf16.msra.mxu0 0
        %600 = vmatprep.subr.bf16.mxu0 0
        %601 = vmatpush1.bf16.msra.mxu0 0
        %602 = vmatprep.subr.bf16.mxu0 0
        %603 = vmatpush1.bf16.msra.mxu0 0
        %604 = vmatprep.subr.bf16.mxu0 0
        %605 = vmatpush1.bf16.msra.mxu0 0
        %606 = vmatprep.subr.bf16.mxu0 0
        %607 = vmatpush1.bf16.msra.mxu0 0
        %608 = vmatprep.subr.bf16.mxu0 0
        %609 = vmatpush1.bf16.msra.mxu0 0
        %610 = vmatprep.subr.bf16.mxu0 0
        %611 = vmatpush1.bf16.msra.mxu0 0
        %612 = vmatprep.subr.bf16.mxu0 0
        %613 = vmatpush1.bf16.msra.mxu0 0
        %614 = vmatprep.subr.bf16.mxu0 0
        %615 = vmatpush1.bf16.msra.mxu0 0
        %616 = vmatprep.subr.bf16.mxu0 0
        %617 = vmatpush1.bf16.msra.mxu0 0
        %618 = vmatprep.subr.bf16.mxu0 0
        %619 = vmatpush1.bf16.msra.mxu0 0
        %620 = vmatprep.subr.bf16.mxu0 0
        %621 = vmatpush1.bf16.msra.mxu0 0
        %622 = vmatprep.subr.bf16.mxu0 0
        %623 = vmatpush1.bf16.msra.mxu0 0
        %624 = vmatprep.subr.bf16.mxu0 0
        %625 = vmatpush1.bf16.msra.mxu0 0
        %626 = vmatprep.subr.bf16.mxu0 0
        %627 = vmatpush1.bf16.msra.mxu0 0
        %628 = vmatprep.mubr.bf16.mxu0 0
        %629 = vmatmul.mubr.bf16.gmra.mrb[0].mxu0 %v591
        %v630 = vpop.f32.mrb[0].mxu0
        %v631 = vadd.f32 0.0, %v630
        %v632 = vpop.f32.mrb[0].mxu0
        %v633 = vpop.f32.mrb[0].mxu0
        %v634 = vpop.f32.mrb[0].mxu0
        %635 = vdwg.mxu0
        %v636 = vpack.c.bf16 %v631, %v631
        %v638 = vunpack.c.l.b16 %v636
        %v639 = vpack.c.b16 %v638, %v638
        %640 = vrot.lane.b32.xlu0 %v639, 16
        %v641 = vpop.permute.xlu0 %640
        %vm643 = vcmask 191616
        %644 = vst.msk [vmem:[%s200] sm:$0xf] %vm643, %v641
        %v645 = vld [vmem:[#allocation2] sm:$0xf]
        %v647 = vunpack.c.l.b16 %v645
        %v648 = vpack.c.b16 %v647, %v647
        %649 = vrot.lane.b32.xlu0 %v648, 104
        %v650 = vpop.permute.xlu0 %649
        %651 = vrot.lane.b32.xlu0 %v648, 72
        %v652 = vpop.permute.xlu0 %651
        %v654 = vsel %vm285, %v650, 0
        %v657 = vsel %vm285, %v652, 0
        %659 = vmatprep.subr.bf16.mxu0 0
        %660 = vmatpush1.bf16.xpose.msra.mxu0 %v657
        %661 = vmatprep.subr.bf16.mxu0 0
        %662 = vmatpush1.bf16.xpose.msra.mxu0 0
        %663 = vmatprep.subr.bf16.mxu0 0
        %664 = vmatpush1.bf16.xpose.msra.mxu0 0
        %665 = vmatprep.subr.bf16.mxu0 0
        %666 = vmatpush1.bf16.xpose.msra.mxu0 0
        %667 = vmatprep.subr.bf16.mxu0 0
        %668 = vmatpush1.bf16.xpose.msra.mxu0 0
        %669 = vmatprep.subr.bf16.mxu0 0
        %670 = vmatpush1.bf16.xpose.msra.mxu0 0
        %671 = vmatprep.subr.bf16.mxu0 0
        %672 = vmatpush1.bf16.xpose.msra.mxu0 0
        %673 = vmatprep.subr.bf16.mxu0 0
        %674 = vmatpush1.bf16.xpose.msra.mxu0 0
        %675 = vmatprep.subr.bf16.mxu0 0
        %676 = vmatpush1.bf16.xpose.msra.mxu0 0
        %677 = vmatprep.subr.bf16.mxu0 0
        %678 = vmatpush1.bf16.xpose.msra.mxu0 0
        %679 = vmatprep.subr.bf16.mxu0 0
        %680 = vmatpush1.bf16.xpose.msra.mxu0 0
        %681 = vmatprep.subr.bf16.mxu0 0
        %682 = vmatpush1.bf16.xpose.msra.mxu0 0
        %683 = vmatprep.subr.bf16.mxu0 0
        %684 = vmatpush1.bf16.xpose.msra.mxu0 0
        %685 = vmatprep.subr.bf16.mxu0 0
        %686 = vmatpush1.bf16.xpose.msra.mxu0 0
        %687 = vmatprep.subr.bf16.mxu0 0
        %688 = vmatpush1.bf16.xpose.msra.mxu0 0
        %689 = vmatprep.subr.bf16.mxu0 0
        %690 = vmatpush1.bf16.xpose.msra.mxu0 0
        %691 = vmatprep.mubr.bf16.mxu0 0
        %692 = vmatmul.mubr.bf16.gmra.mrb[0].mxu0 %v654
        %v693 = vpop.f32.mrb[0].mxu0
        %v694 = vadd.f32 0.0, %v693
        %v695 = vpop.f32.mrb[0].mxu0
        %v696 = vpop.f32.mrb[0].mxu0
        %v697 = vpop.f32.mrb[0].mxu0
        %698 = vdwg.mxu0
        %v699 = vsel %vm278, %v694, -1e+09
        %v700 = vsel %vm285, %v699, -inf
        %701 = vmax.xlane.f32.xlu0 %v700
        %v702 = vpop.xlane.xlu0 %701
        %v703 = vsub.f32 %v699, %v702
        %v704 = vmul.f32 %v703, 1.442695
        %v705 = vpow.pop %v704
        %v706 = vsel %vm285, %v705, 0.0
        %707 = vadd.xlane.f32.xlu0 %v706
        %v708 = vpop.xlane.xlu0 %707
        %v709 = vrcp.pop %v708
        %v710 = vmul.f32 %v705, %v709
        %v711 = vpack.c.bf16 %v710, %v710
        %712 = vrot.lane.b32.xlu0 %v648, 40
        %v713 = vpop.permute.xlu0 %712
        %v715 = vsel %vm285, %v711, 0
        %v718 = vsel %vm350, %v713, 0
        %720 = vmatprep.subr.bf16.mxu0 0
        %721 = vmatpush1.bf16.msra.mxu0 %v718
        %722 = vmatprep.subr.bf16.mxu0 0
        %723 = vmatpush1.bf16.msra.mxu0 0
        %724 = vmatprep.subr.bf16.mxu0 0
        %725 = vmatpush1.bf16.msra.mxu0 0
        %726 = vmatprep.subr.bf16.mxu0 0
        %727 = vmatpush1.bf16.msra.mxu0 0
        %728 = vmatprep.subr.bf16.mxu0 0
        %729 = vmatpush1.bf16.msra.mxu0 0
        %730 = vmatprep.subr.bf16.mxu0 0
        %731 = vmatpush1.bf16.msra.mxu0 0
        %732 = vmatprep.subr.bf16.mxu0 0
        %733 = vmatpush1.bf16.msra.mxu0 0
        %734 = vmatprep.subr.bf16.mxu0 0
        %735 = vmatpush1.bf16.msra.mxu0 0
        %736 = vmatprep.subr.bf16.mxu0 0
        %737 = vmatpush1.bf16.msra.mxu0 0
        %738 = vmatprep.subr.bf16.mxu0 0
        %739 = vmatpush1.bf16.msra.mxu0 0
        %740 = vmatprep.subr.bf16.mxu0 0
        %741 = vmatpush1.bf16.msra.mxu0 0
        %742 = vmatprep.subr.bf16.mxu0 0
        %743 = vmatpush1.bf16.msra.mxu0 0
        %744 = vmatprep.subr.bf16.mxu0 0
        %745 = vmatpush1.bf16.msra.mxu0 0
        %746 = vmatprep.subr.bf16.mxu0 0
        %747 = vmatpush1.bf16.msra.mxu0 0
        %748 = vmatprep.subr.bf16.mxu0 0
        %749 = vmatpush1.bf16.msra.mxu0 0
        %750 = vmatprep.subr.bf16.mxu0 0
        %751 = vmatpush1.bf16.msra.mxu0 0
        %752 = vmatprep.mubr.bf16.mxu0 0
        %753 = vmatmul.mubr.bf16.gmra.mrb[0].mxu0 %v715
        %v754 = vpop.f32.mrb[0].mxu0
        %v755 = vadd.f32 0.0, %v754
        %v756 = vpop.f32.mrb[0].mxu0
        %v757 = vpop.f32.mrb[0].mxu0
        %v758 = vpop.f32.mrb[0].mxu0
        %759 = vdwg.mxu0
        %v760 = vpack.c.bf16 %v755, %v755
        %v762 = vunpack.c.l.b16 %v760
        %v763 = vpack.c.b16 %v762, %v762
        %764 = vrot.lane.b32.xlu0 %v763, 24
        %v765 = vpop.permute.xlu0 %764
        %vm767 = vcmask 257216
        %768 = vst.msk [vmem:[%s200] sm:$0xf] %vm767, %v765
        %s769 = sand.u32 %s97, 1
        %s770 = scalar_lea.sflag [#allocation5], %s769
        %s771 = sand.u32 %s97, 1
        %s772 = smul.addr %s771, 4
        %s773 = scalar_lea.vmem [#allocation8], %s772
        // Predicated region
        $region41: #{tpu_custom_call.1} parent=31 // pred_check
          %p774 = pneg %p107
        $region42: #{tpu_custom_call.1} parent=31 // pred_check_branch
          %776 = sbr.rel (%p774) target = $region44
        $region43: #{tpu_custom_call.1} parent=31 // pred_region
          %s778 = ssub.s32 64, 64
          %779 = vsyncadd %s770, %s778
          %s780 = smul.addr %s21, 64
          %s781 = scalar_lea.hbm %s3, %s780
          %s783 = sshll.u32 %s773, 4
          %s784 = int_to_ptr.vmem [resolvable:$true] %s783
          %786 = dma.vmem_to_hbm [thread:$0]  %s784, 64, %s781, %s770
        $region44: #{tpu_custom_call.1} parent=31 // pred_fallthru
          _
      $region32: #{tpu_custom_call.1} parent=5 // pred_fallthru
        _
      %p787 = scmp.le.s32.totalorder 2, %s16
      // Predicated region
      $region45: #{tpu_custom_call.1} parent=5 // pred_check
        %p788 = pneg %p787
      $region46: #{tpu_custom_call.1} parent=5 // pred_check_branch
        %790 = sbr.rel (%p788) target = $region48
      $region47: #{tpu_custom_call.1} parent=5 // pred_region
        %s791 = ssub.s32 %s16, 2
        // Predicated region
        $region49: #{tpu_custom_call.1} parent=47 // pred_check
          %p792 = pneg %p113
        $region50: #{tpu_custom_call.1} parent=47 // pred_check_branch
          %794 = sbr.rel (%p792) target = $region52
        $region51: #{tpu_custom_call.1} parent=47 // pred_region
          %s795 = sand.u32 %s98, 1
          %s796 = scalar_lea.sflag [#allocation5], %s795
          %s797 = sand.u32 %s98, 1
          %s798 = smul.addr %s797, 4
          %s799 = scalar_lea.vmem [#allocation8], %s798
          %800 = dma.done %s796, 64
        $region52: #{tpu_custom_call.1} parent=47 // pred_fallthru
          _
      $region48: #{tpu_custom_call.1} parent=5 // pred_fallthru
        _
    $region6: #{tpu_custom_call.1} parent=1 // loop_footer
      %s20 = sadd.s32 1, %s16
    $region7: #{tpu_custom_call.1} parent=1 // loop_footer_branch
      %15 = sbr.rel target = $region3
    $region8: #{tpu_custom_call.1} parent=1 // loop_exit
      _
    %801 = vsyncpa [#allocation4], 1
    %s802 = scalar_lea.sflag [#allocation4], 1
    %803 = vsyncpa %s802, 1
    %804 = vsyncpa [#allocation7], 1
    %805 = vsyncpa [#allocation5], 1
    %s806 = scalar_lea.sflag [#allocation5], 1
    %807 = vsyncpa %s806, 1

</llo_original>
